<compile_context>
chip_gen: v7x
topology: tpu7x:2x2x1
jax: 0.10.0
libtpu: 0.0.40
codegen_flags: <defaults>
</compile_context>

<pallas_src>
import jax
import jax.numpy as jnp
from jax.experimental import pallas as pl
from jax.experimental.pallas import tpu as pltpu

_UNROLL_LIMIT = 64  # fully unroll the in-kernel Cin reduction below this size


# ---------------------------------------------------------------------------
# Pallas kernel
#   x_ref : (2, B,   Cin,  TP)   real/imag planes of the input modes (lane = mode)
#   w_ref : (2, Cin, Cout, TP)   real/imag planes of the weights
#   o_ref : (2, B,   Cout, TP)   real/imag planes of the output modes
# One program handles one (mode-block, lane-tile).  The Cin reduction is a VPU
# broadcast-multiply-accumulate; loads are per-channel so vreg pressure stays low.
# ---------------------------------------------------------------------------
def _spectral_mix_kernel(x_ref, w_ref, o_ref):
    _, B, Cin, TP = x_ref.shape
    Cout = w_ref.shape[2]

    if Cin <= _UNROLL_LIMIT:
        acc_r = None
        acc_i = None
        for i in range(Cin):
            xr_i = x_ref[0, :, i, :][:, None, :]   # (B, 1, TP)
            xi_i = x_ref[1, :, i, :][:, None, :]
            wr_i = w_ref[0, i][None, :, :]         # (1, Cout, TP)
            wi_i = w_ref[1, i][None, :, :]
            tr = xr_i * wr_i - xi_i * wi_i         # (B, Cout, TP)
            ti = xr_i * wi_i + xi_i * wr_i
            acc_r = tr if acc_r is None else acc_r + tr
            acc_i = ti if acc_i is None else acc_i + ti
    else:
        def body(i, accs):
            a_r, a_i = accs
            xr_i = x_ref[0, :, pl.ds(i, 1), :]     # (B, 1, TP)
            xi_i = x_ref[1, :, pl.ds(i, 1), :]
            wr_i = w_ref[0, pl.ds(i, 1)]           # (1, Cout, TP)
            wi_i = w_ref[1, pl.ds(i, 1)]
            a_r = a_r + xr_i * wr_i - xi_i * wi_i
            a_i = a_i + xr_i * wi_i + xi_i * wr_i
            return a_r, a_i

        zero = jnp.zeros((B, Cout, TP), jnp.float32)
        acc_r, acc_i = jax.lax.fori_loop(0, Cin, body, (zero, zero))

    o_ref[0] = acc_r
    o_ref[1] = acc_i


def _round_up(n, m):
    return ((n + m - 1) // m) * m


# ---------------------------------------------------------------------------
# Wrapper: complex 'sbixy,sioxy->sboxy' over the two stacked mode blocks.
# ---------------------------------------------------------------------------
def spectral_mix_pallas(x_blocks, w_blocks):
    """x_blocks: complex64 (2, B, Cin, m1, m2); w_blocks: complex64 (2, Cin, Cout, m1, m2).
    Returns complex64 (2, B, Cout, m1, m2)."""
    S, B, Cin, m1, m2 = x_blocks.shape
    Cout = w_blocks.shape[2]
    P = m1 * m2
    Pp = _round_up(P, 128)                     # lane-dense, unmasked stores
    TP = 256 if Pp % 256 == 0 else 128         # lane tile (multiple of 128, divides Pp)

    # Pack real/imag on one leading-2 axis; flatten the mode axis to the lane dim.
    # These are contiguous reshapes + a zero pad: no minor-dim transposes.
    xri = jnp.stack([jnp.real(x_blocks), jnp.imag(x_blocks)], axis=1)
    xri = xri.astype(jnp.float32).reshape(S, 2, B, Cin, P)
    xri = jnp.pad(xri, ((0, 0),) * 4 + ((0, Pp - P),))
    wri = jnp.stack([jnp.real(w_blocks), jnp.imag(w_blocks)], axis=1)
    wri = wri.astype(jnp.float32).reshape(S, 2, Cin, Cout, P)
    wri = jnp.pad(wri, ((0, 0),) * 4 + ((0, Pp - P),))

    grid = (S, Pp // TP)                       # (2 mode-blocks, lane tiles)

    out = pl.pallas_call(
        _spectral_mix_kernel,
        out_shape=jax.ShapeDtypeStruct((S, 2, B, Cout, Pp), jnp.float32),
        grid_spec=pltpu.PrefetchScalarGridSpec(
            num_scalar_prefetch=0,
            grid=grid,
            in_specs=[
                pl.BlockSpec((None, 2, B, Cin, TP), lambda s, t: (s, 0, 0, 0, t)),
                pl.BlockSpec((None, 2, Cin, Cout, TP), lambda s, t: (s, 0, 0, 0, t)),
            ],
            out_specs=pl.BlockSpec((None, 2, B, Cout, TP), lambda s, t: (s, 0, 0, 0, t)),
        ),
        compiler_params=pltpu.CompilerParams(
            # both axes fully independent; the extent-2 leading axis feeds both
            # TensorCores on v7x, and spatial tiles shard on v5e/v6e megacore.
            dimension_semantics=("parallel", "parallel"),
            # headroom under v7x's 64 MiB VMEM (tiles are small anyway)
            vmem_limit_bytes=48 * 1024 * 1024,
        ),
    )(xri, wri)

    out_c = (out[:, 0] + 1j * out[:, 1]).astype(jnp.complex64)   # (S, B, Cout, Pp)
    return out_c[..., :P].reshape(S, B, Cout, m1, m2)


# ---------------------------------------------------------------------------
# SpectralConv2d_fast forward pass
# ---------------------------------------------------------------------------
def spectral_conv2d_fast(x, weights1, weights2, modes1, modes2):
    """x: float32 (B, Cin, H, W); weights*: complex64 (Cin, Cout, modes1, modes2)."""
    B, Cin, H, W = x.shape
    Cout = weights1.shape[1]
    Wr = W // 2 + 1

    x_ft = jnp.fft.rfft2(x)  # (B, Cin, H, Wr) complex64   (no Pallas FFT primitive)

    # Stack top/bottom mode blocks + both weight tensors -> one fused pallas_call.
    x_blocks = jnp.stack(
        [x_ft[:, :, :modes1, :modes2], x_ft[:, :, H - modes1:, :modes2]], axis=0)
    w_blocks = jnp.stack([weights1, weights2], axis=0).astype(jnp.complex64)

    out_blocks = spectral_mix_pallas(x_blocks, w_blocks)   # (2, B, Cout, m1, m2)
    top, bot = out_blocks[0], out_blocks[1]

    if 2 * modes1 <= H:
        # Assemble out_ft with a single concat + pad (one HBM write) instead of
        # zero-fill followed by two scatter writes.
        mid = jnp.zeros((B, Cout, H - 2 * modes1, modes2), jnp.complex64)
        left = jnp.concatenate([top, mid, bot], axis=2)               # (B, Cout, H, m2)
        out_ft = jnp.pad(left, ((0, 0), (0, 0), (0, 0), (0, Wr - modes2)))
    else:
        # inherited corner case (overlapping mode rows): match torch's overwrite order
        out_ft = jnp.zeros((B, Cout, H, Wr), jnp.complex64)
        out_ft = out_ft.at[:, :, :modes1, :modes2].set(top)
        out_ft = out_ft.at[:, :, H - modes1:, :modes2].set(bot)

    return jnp.fft.irfft2(out_ft, s=(H, W))


# ---------------------------------------------------------------------------
# Parameter init (deterministic, synthetic — mirrors the shapes in __init__)
# ---------------------------------------------------------------------------
def init_weights(key, in_channels, out_channels, modes1, modes2, std=1.0):
    scale = 1.0 / (in_channels * out_channels) * std
    k1, k2, k3, k4 = jax.random.split(key, 4)
    shape = (in_channels, out_channels, modes1, modes2)
    # torch.rand on cfloat = uniform[0,1) for real and imag independently
    w1 = scale * (jax.random.uniform(k1, shape, jnp.float32)
                  + 1j * jax.random.uniform(k2, shape, jnp.float32))
    w2 = scale * (jax.random.uniform(k3, shape, jnp.float32)
                  + 1j * jax.random.uniform(k4, shape, jnp.float32))
    return w1.astype(jnp.complex64), w2.astype(jnp.complex64)


if __name__ == "__main__":
    B, Cin, Cout = 2, 4, 4
    H = W = 16
    modes1 = modes2 = 4

    key = jax.random.PRNGKey(0)
    kx, kw = jax.random.split(key)
    x = jax.random.normal(kx, (B, Cin, H, W), dtype=jnp.float32)
    w1, w2 = init_weights(kw, Cin, Cout, modes1, modes2, std=1.0)

    fwd = jax.jit(spectral_conv2d_fast, static_argnums=(3, 4))
    out = jax.block_until_ready(fwd(x, w1, w2, modes1, modes2))

    # sanity check against a pure-JAX reference of the same forward
    hp = jax.lax.Precision.HIGHEST
    x_ft = jnp.fft.rfft2(x)
    ref_ft = jnp.zeros((B, Cout, H, W // 2 + 1), dtype=jnp.complex64)
    ref_ft = ref_ft.at[:, :, :modes1, :modes2].set(
        jnp.einsum('bixy,ioxy->boxy', x_ft[:, :, :modes1, :modes2], w1, precision=hp))
    ref_ft = ref_ft.at[:, :, H - modes1:, :modes2].set(
        jnp.einsum('bixy,ioxy->boxy', x_ft[:, :, H - modes1:, :modes2], w2, precision=hp))
    ref = jnp.fft.irfft2(ref_ft, s=(H, W))

    assert out.shape == (B, Cout, H, W)
    assert jnp.allclose(out, ref, atol=1e-4, rtol=1e-4), float(jnp.max(jnp.abs(out - ref)))
    print("KERNEL_OK")
</pallas_src>

<mosaic_0001>
module attributes {stable_mosaic.version = 11 : i64} {
  func.func @_spectral_mix_kernel(%arg0: i32, %arg1: i32, %arg2: memref<1x2x2x4x128xf32, #tpu.memory_space<vmem>>, %arg3: memref<1x2x4x4x128xf32, #tpu.memory_space<vmem>>, %arg4: memref<1x2x2x4x128xf32, #tpu.memory_space<vmem>>) attributes {dimension_semantics = [#tpu.dimension_semantics<parallel>, #tpu.dimension_semantics<parallel>], iteration_bounds = array<i64: 2, 1>, scalar_prefetch = 0 : i64, scratch_operands = 0 : i64, tpu.core_type = #tpu.core_type<tc>, window_params = [{transform_indices = @transform_0, window_bounds = array<i64: 1, 2, 2, 4, 128>}, {transform_indices = @transform_1, window_bounds = array<i64: 1, 2, 4, 4, 128>}, {transform_indices = @transform_2, window_bounds = array<i64: 1, 2, 2, 4, 128>}]} {
    %c0 = arith.constant 0 : index
    %c0_0 = arith.constant 0 : index
    %c0_1 = arith.constant 0 : index
    %c0_2 = arith.constant 0 : index
    %c0_3 = arith.constant 0 : index
    %0 = vector.load %arg2[%c0, %c0_0, %c0_1, %c0_2, %c0_3] : memref<1x2x2x4x128xf32, #tpu.memory_space<vmem>>, vector<1x1x2x1x128xf32>
    %1 = vector.shape_cast %0 : vector<1x1x2x1x128xf32> to vector<2x128xf32>
    %2 = vector.shape_cast %1 : vector<2x128xf32> to vector<2x1x128xf32>
    %c0_4 = arith.constant 0 : index
    %c1 = arith.constant 1 : index
    %c0_5 = arith.constant 0 : index
    %c0_6 = arith.constant 0 : index
    %c0_7 = arith.constant 0 : index
    %3 = vector.load %arg2[%c0_4, %c1, %c0_5, %c0_6, %c0_7] : memref<1x2x2x4x128xf32, #tpu.memory_space<vmem>>, vector<1x1x2x1x128xf32>
    %4 = vector.shape_cast %3 : vector<1x1x2x1x128xf32> to vector<2x128xf32>
    %5 = vector.shape_cast %4 : vector<2x128xf32> to vector<2x1x128xf32>
    %c0_8 = arith.constant 0 : index
    %c0_9 = arith.constant 0 : index
    %c0_10 = arith.constant 0 : index
    %c0_11 = arith.constant 0 : index
    %c0_12 = arith.constant 0 : index
    %6 = vector.load %arg3[%c0_8, %c0_9, %c0_10, %c0_11, %c0_12] : memref<1x2x4x4x128xf32, #tpu.memory_space<vmem>>, vector<1x1x1x4x128xf32>
    %7 = vector.shape_cast %6 : vector<1x1x1x4x128xf32> to vector<4x128xf32>
    %8 = vector.shape_cast %7 : vector<4x128xf32> to vector<1x4x128xf32>
    %c0_13 = arith.constant 0 : index
    %c1_14 = arith.constant 1 : index
    %c0_15 = arith.constant 0 : index
    %c0_16 = arith.constant 0 : index
    %c0_17 = arith.constant 0 : index
    %9 = vector.load %arg3[%c0_13, %c1_14, %c0_15, %c0_16, %c0_17] : memref<1x2x4x4x128xf32, #tpu.memory_space<vmem>>, vector<1x1x1x4x128xf32>
    %10 = vector.shape_cast %9 : vector<1x1x1x4x128xf32> to vector<4x128xf32>
    %11 = vector.shape_cast %10 : vector<4x128xf32> to vector<1x4x128xf32>
    %12 = vector.broadcast %2 : vector<2x1x128xf32> to vector<2x4x128xf32>
    %13 = vector.broadcast %8 : vector<1x4x128xf32> to vector<2x4x128xf32>
    %14 = arith.mulf %12, %13 : vector<2x4x128xf32>
    %15 = vector.broadcast %5 : vector<2x1x128xf32> to vector<2x4x128xf32>
    %16 = vector.broadcast %11 : vector<1x4x128xf32> to vector<2x4x128xf32>
    %17 = arith.mulf %15, %16 : vector<2x4x128xf32>
    %18 = arith.subf %14, %17 : vector<2x4x128xf32>
    %19 = vector.broadcast %2 : vector<2x1x128xf32> to vector<2x4x128xf32>
    %20 = vector.broadcast %11 : vector<1x4x128xf32> to vector<2x4x128xf32>
    %21 = arith.mulf %19, %20 : vector<2x4x128xf32>
    %22 = vector.broadcast %5 : vector<2x1x128xf32> to vector<2x4x128xf32>
    %23 = vector.broadcast %8 : vector<1x4x128xf32> to vector<2x4x128xf32>
    %24 = arith.mulf %22, %23 : vector<2x4x128xf32>
    %25 = arith.addf %21, %24 : vector<2x4x128xf32>
    %c0_18 = arith.constant 0 : index
    %c0_19 = arith.constant 0 : index
    %c0_20 = arith.constant 0 : index
    %c1_21 = arith.constant 1 : index
    %c0_22 = arith.constant 0 : index
    %26 = vector.load %arg2[%c0_18, %c0_19, %c0_20, %c1_21, %c0_22] : memref<1x2x2x4x128xf32, #tpu.memory_space<vmem>>, vector<1x1x2x1x128xf32>
    %27 = vector.shape_cast %26 : vector<1x1x2x1x128xf32> to vector<2x128xf32>
    %28 = vector.shape_cast %27 : vector<2x128xf32> to vector<2x1x128xf32>
    %c0_23 = arith.constant 0 : index
    %c1_24 = arith.constant 1 : index
    %c0_25 = arith.constant 0 : index
    %c1_26 = arith.constant 1 : index
    %c0_27 = arith.constant 0 : index
    %29 = vector.load %arg2[%c0_23, %c1_24, %c0_25, %c1_26, %c0_27] : memref<1x2x2x4x128xf32, #tpu.memory_space<vmem>>, vector<1x1x2x1x128xf32>
    %30 = vector.shape_cast %29 : vector<1x1x2x1x128xf32> to vector<2x128xf32>
    %31 = vector.shape_cast %30 : vector<2x128xf32> to vector<2x1x128xf32>
    %c0_28 = arith.constant 0 : index
    %c0_29 = arith.constant 0 : index
    %c1_30 = arith.constant 1 : index
    %c0_31 = arith.constant 0 : index
    %c0_32 = arith.constant 0 : index
    %32 = vector.load %arg3[%c0_28, %c0_29, %c1_30, %c0_31, %c0_32] : memref<1x2x4x4x128xf32, #tpu.memory_space<vmem>>, vector<1x1x1x4x128xf32>
    %33 = vector.shape_cast %32 : vector<1x1x1x4x128xf32> to vector<4x128xf32>
    %34 = vector.shape_cast %33 : vector<4x128xf32> to vector<1x4x128xf32>
    %c0_33 = arith.constant 0 : index
    %c1_34 = arith.constant 1 : index
    %c1_35 = arith.constant 1 : index
    %c0_36 = arith.constant 0 : index
    %c0_37 = arith.constant 0 : index
    %35 = vector.load %arg3[%c0_33, %c1_34, %c1_35, %c0_36, %c0_37] : memref<1x2x4x4x128xf32, #tpu.memory_space<vmem>>, vector<1x1x1x4x128xf32>
    %36 = vector.shape_cast %35 : vector<1x1x1x4x128xf32> to vector<4x128xf32>
    %37 = vector.shape_cast %36 : vector<4x128xf32> to vector<1x4x128xf32>
    %38 = vector.broadcast %28 : vector<2x1x128xf32> to vector<2x4x128xf32>
    %39 = vector.broadcast %34 : vector<1x4x128xf32> to vector<2x4x128xf32>
    %40 = arith.mulf %38, %39 : vector<2x4x128xf32>
    %41 = vector.broadcast %31 : vector<2x1x128xf32> to vector<2x4x128xf32>
    %42 = vector.broadcast %37 : vector<1x4x128xf32> to vector<2x4x128xf32>
    %43 = arith.mulf %41, %42 : vector<2x4x128xf32>
    %44 = arith.subf %40, %43 : vector<2x4x128xf32>
    %45 = vector.broadcast %28 : vector<2x1x128xf32> to vector<2x4x128xf32>
    %46 = vector.broadcast %37 : vector<1x4x128xf32> to vector<2x4x128xf32>
    %47 = arith.mulf %45, %46 : vector<2x4x128xf32>
    %48 = vector.broadcast %31 : vector<2x1x128xf32> to vector<2x4x128xf32>
    %49 = vector.broadcast %34 : vector<1x4x128xf32> to vector<2x4x128xf32>
    %50 = arith.mulf %48, %49 : vector<2x4x128xf32>
    %51 = arith.addf %47, %50 : vector<2x4x128xf32>
    %52 = arith.addf %18, %44 : vector<2x4x128xf32>
    %53 = arith.addf %25, %51 : vector<2x4x128xf32>
    %c0_38 = arith.constant 0 : index
    %c0_39 = arith.constant 0 : index
    %c0_40 = arith.constant 0 : index
    %c2 = arith.constant 2 : index
    %c0_41 = arith.constant 0 : index
    %54 = vector.load %arg2[%c0_38, %c0_39, %c0_40, %c2, %c0_41] : memref<1x2x2x4x128xf32, #tpu.memory_space<vmem>>, vector<1x1x2x1x128xf32>
    %55 = vector.shape_cast %54 : vector<1x1x2x1x128xf32> to vector<2x128xf32>
    %56 = vector.shape_cast %55 : vector<2x128xf32> to vector<2x1x128xf32>
    %c0_42 = arith.constant 0 : index
    %c1_43 = arith.constant 1 : index
    %c0_44 = arith.constant 0 : index
    %c2_45 = arith.constant 2 : index
    %c0_46 = arith.constant 0 : index
    %57 = vector.load %arg2[%c0_42, %c1_43, %c0_44, %c2_45, %c0_46] : memref<1x2x2x4x128xf32, #tpu.memory_space<vmem>>, vector<1x1x2x1x128xf32>
    %58 = vector.shape_cast %57 : vector<1x1x2x1x128xf32> to vector<2x128xf32>
    %59 = vector.shape_cast %58 : vector<2x128xf32> to vector<2x1x128xf32>
    %c0_47 = arith.constant 0 : index
    %c0_48 = arith.constant 0 : index
    %c2_49 = arith.constant 2 : index
    %c0_50 = arith.constant 0 : index
    %c0_51 = arith.constant 0 : index
    %60 = vector.load %arg3[%c0_47, %c0_48, %c2_49, %c0_50, %c0_51] : memref<1x2x4x4x128xf32, #tpu.memory_space<vmem>>, vector<1x1x1x4x128xf32>
    %61 = vector.shape_cast %60 : vector<1x1x1x4x128xf32> to vector<4x128xf32>
    %62 = vector.shape_cast %61 : vector<4x128xf32> to vector<1x4x128xf32>
    %c0_52 = arith.constant 0 : index
    %c1_53 = arith.constant 1 : index
    %c2_54 = arith.constant 2 : index
    %c0_55 = arith.constant 0 : index
    %c0_56 = arith.constant 0 : index
    %63 = vector.load %arg3[%c0_52, %c1_53, %c2_54, %c0_55, %c0_56] : memref<1x2x4x4x128xf32, #tpu.memory_space<vmem>>, vector<1x1x1x4x128xf32>
    %64 = vector.shape_cast %63 : vector<1x1x1x4x128xf32> to vector<4x128xf32>
    %65 = vector.shape_cast %64 : vector<4x128xf32> to vector<1x4x128xf32>
    %66 = vector.broadcast %56 : vector<2x1x128xf32> to vector<2x4x128xf32>
    %67 = vector.broadcast %62 : vector<1x4x128xf32> to vector<2x4x128xf32>
    %68 = arith.mulf %66, %67 : vector<2x4x128xf32>
    %69 = vector.broadcast %59 : vector<2x1x128xf32> to vector<2x4x128xf32>
    %70 = vector.broadcast %65 : vector<1x4x128xf32> to vector<2x4x128xf32>
    %71 = arith.mulf %69, %70 : vector<2x4x128xf32>
    %72 = arith.subf %68, %71 : vector<2x4x128xf32>
    %73 = vector.broadcast %56 : vector<2x1x128xf32> to vector<2x4x128xf32>
    %74 = vector.broadcast %65 : vector<1x4x128xf32> to vector<2x4x128xf32>
    %75 = arith.mulf %73, %74 : vector<2x4x128xf32>
    %76 = vector.broadcast %59 : vector<2x1x128xf32> to vector<2x4x128xf32>
    %77 = vector.broadcast %62 : vector<1x4x128xf32> to vector<2x4x128xf32>
    %78 = arith.mulf %76, %77 : vector<2x4x128xf32>
    %79 = arith.addf %75, %78 : vector<2x4x128xf32>
    %80 = arith.addf %52, %72 : vector<2x4x128xf32>
    %81 = arith.addf %53, %79 : vector<2x4x128xf32>
    %c0_57 = arith.constant 0 : index
    %c0_58 = arith.constant 0 : index
    %c0_59 = arith.constant 0 : index
    %c3 = arith.constant 3 : index
    %c0_60 = arith.constant 0 : index
    %82 = vector.load %arg2[%c0_57, %c0_58, %c0_59, %c3, %c0_60] : memref<1x2x2x4x128xf32, #tpu.memory_space<vmem>>, vector<1x1x2x1x128xf32>
    %83 = vector.shape_cast %82 : vector<1x1x2x1x128xf32> to vector<2x128xf32>
    %84 = vector.shape_cast %83 : vector<2x128xf32> to vector<2x1x128xf32>
    %c0_61 = arith.constant 0 : index
    %c1_62 = arith.constant 1 : index
    %c0_63 = arith.constant 0 : index
    %c3_64 = arith.constant 3 : index
    %c0_65 = arith.constant 0 : index
    %85 = vector.load %arg2[%c0_61, %c1_62, %c0_63, %c3_64, %c0_65] : memref<1x2x2x4x128xf32, #tpu.memory_space<vmem>>, vector<1x1x2x1x128xf32>
    %86 = vector.shape_cast %85 : vector<1x1x2x1x128xf32> to vector<2x128xf32>
    %87 = vector.shape_cast %86 : vector<2x128xf32> to vector<2x1x128xf32>
    %c0_66 = arith.constant 0 : index
    %c0_67 = arith.constant 0 : index
    %c3_68 = arith.constant 3 : index
    %c0_69 = arith.constant 0 : index
    %c0_70 = arith.constant 0 : index
    %88 = vector.load %arg3[%c0_66, %c0_67, %c3_68, %c0_69, %c0_70] : memref<1x2x4x4x128xf32, #tpu.memory_space<vmem>>, vector<1x1x1x4x128xf32>
    %89 = vector.shape_cast %88 : vector<1x1x1x4x128xf32> to vector<4x128xf32>
    %90 = vector.shape_cast %89 : vector<4x128xf32> to vector<1x4x128xf32>
    %c0_71 = arith.constant 0 : index
    %c1_72 = arith.constant 1 : index
    %c3_73 = arith.constant 3 : index
    %c0_74 = arith.constant 0 : index
    %c0_75 = arith.constant 0 : index
    %91 = vector.load %arg3[%c0_71, %c1_72, %c3_73, %c0_74, %c0_75] : memref<1x2x4x4x128xf32, #tpu.memory_space<vmem>>, vector<1x1x1x4x128xf32>
    %92 = vector.shape_cast %91 : vector<1x1x1x4x128xf32> to vector<4x128xf32>
    %93 = vector.shape_cast %92 : vector<4x128xf32> to vector<1x4x128xf32>
    %94 = vector.broadcast %84 : vector<2x1x128xf32> to vector<2x4x128xf32>
    %95 = vector.broadcast %90 : vector<1x4x128xf32> to vector<2x4x128xf32>
    %96 = arith.mulf %94, %95 : vector<2x4x128xf32>
    %97 = vector.broadcast %87 : vector<2x1x128xf32> to vector<2x4x128xf32>
    %98 = vector.broadcast %93 : vector<1x4x128xf32> to vector<2x4x128xf32>
    %99 = arith.mulf %97, %98 : vector<2x4x128xf32>
    %100 = arith.subf %96, %99 : vector<2x4x128xf32>
    %101 = vector.broadcast %84 : vector<2x1x128xf32> to vector<2x4x128xf32>
    %102 = vector.broadcast %93 : vector<1x4x128xf32> to vector<2x4x128xf32>
    %103 = arith.mulf %101, %102 : vector<2x4x128xf32>
    %104 = vector.broadcast %87 : vector<2x1x128xf32> to vector<2x4x128xf32>
    %105 = vector.broadcast %90 : vector<1x4x128xf32> to vector<2x4x128xf32>
    %106 = arith.mulf %104, %105 : vector<2x4x128xf32>
    %107 = arith.addf %103, %106 : vector<2x4x128xf32>
    %108 = arith.addf %80, %100 : vector<2x4x128xf32>
    %109 = arith.addf %81, %107 : vector<2x4x128xf32>
    %c0_76 = arith.constant 0 : index
    %c0_77 = arith.constant 0 : index
    %c0_78 = arith.constant 0 : index
    %c0_79 = arith.constant 0 : index
    %c0_80 = arith.constant 0 : index
    %110 = vector.load %arg4[%c0_76, %c0_77, %c0_78, %c0_79, %c0_80] : memref<1x2x2x4x128xf32, #tpu.memory_space<vmem>>, vector<1x1x2x4x128xf32>
    %111 = vector.shape_cast %110 : vector<1x1x2x4x128xf32> to vector<2x4x128xf32>
    %112 = vector.shape_cast %108 : vector<2x4x128xf32> to vector<1x1x2x4x128xf32>
    tpu.vector_store %arg4[%c0_76, %c0_77, %c0_78, %c0_79, %c0_80], %112 {strides = array<i32>} : memref<1x2x2x4x128xf32, #tpu.memory_space<vmem>>, vector<1x1x2x4x128xf32>,
    %c0_81 = arith.constant 0 : index
    %c1_82 = arith.constant 1 : index
    %c0_83 = arith.constant 0 : index
    %c0_84 = arith.constant 0 : index
    %c0_85 = arith.constant 0 : index
    %113 = vector.load %arg4[%c0_81, %c1_82, %c0_83, %c0_84, %c0_85] : memref<1x2x2x4x128xf32, #tpu.memory_space<vmem>>, vector<1x1x2x4x128xf32>
    %114 = vector.shape_cast %113 : vector<1x1x2x4x128xf32> to vector<2x4x128xf32>
    %115 = vector.shape_cast %109 : vector<2x4x128xf32> to vector<1x1x2x4x128xf32>
    tpu.vector_store %arg4[%c0_81, %c1_82, %c0_83, %c0_84, %c0_85], %115 {strides = array<i32>} : memref<1x2x2x4x128xf32, #tpu.memory_space<vmem>>, vector<1x1x2x4x128xf32>,
    return
  }
  func.func @transform_0(%arg0: i32, %arg1: i32) -> (i32, i32, i32, i32, i32) {
    %c0_i32 = arith.constant 0 : i32
    %c0_i32_0 = arith.constant 0 : i32
    %c0_i32_1 = arith.constant 0 : i32
    %c0_i32_2 = arith.constant 0 : i32
    return %arg0, %c0_i32, %c0_i32_0, %c0_i32_1, %arg1 : i32, i32, i32, i32, i32
  }
  func.func @transform_1(%arg0: i32, %arg1: i32) -> (i32, i32, i32, i32, i32) {
    %c0_i32 = arith.constant 0 : i32
    %c0_i32_0 = arith.constant 0 : i32
    %c0_i32_1 = arith.constant 0 : i32
    %c0_i32_2 = arith.constant 0 : i32
    return %arg0, %c0_i32, %c0_i32_0, %c0_i32_1, %arg1 : i32, i32, i32, i32, i32
  }
  func.func @transform_2(%arg0: i32, %arg1: i32) -> (i32, i32, i32, i32, i32) {
    %c0_i32 = arith.constant 0 : i32
    %c0_i32_0 = arith.constant 0 : i32
    %c0_i32_1 = arith.constant 0 : i32
    %c0_i32_2 = arith.constant 0 : i32
    return %arg0, %c0_i32, %c0_i32_0, %c0_i32_1, %arg1 : i32, i32, i32, i32, i32
  }
}

</mosaic_0001>

<llo_original>
// kernel: custom-call
$region0: #{custom-call}
  %s0 = inlined_call_operand.hbm [shape: c64[4,4,4,4], index: 0, kind: input, shape index: {}]
  %s1 = inlined_call_operand.vmem [shape: f32[4,4,4,4], index: 1, kind: output, shape index: {}]
  $region1: #{custom-call} parent=0
    #allocation0 [shape = 's32[1]{0}', space=sflag, size = 0x4, scoped, tag = 'scoped memory for custom-call']
    %2 = vsyncpa [#allocation0], 0
    %s3 = sshll.u32 %s1, 4
    %s4 = int_to_ptr.vmem [resolvable:$true] %s3
    %6 = dma.hbm_to_vmem [thread:$0]  %s0, 1024, %s4, [#allocation0]
    %7 = dma.done [#allocation0], 1024
    %8 = vsyncpa [#allocation0], 1

// kernel: custom-call.1
$region0: #{custom-call.1}
  %s0 = inlined_call_operand.hbm [shape: c64[4,4,4,4], index: 0, kind: input, shape index: {}]
  %s1 = inlined_call_operand.vmem [shape: f32[4,4,4,4], index: 1, kind: output, shape index: {}]
  %s2 = scalar_lea.hbm %s0, 1024
  $region1: #{custom-call.1} parent=0
    #allocation0 [shape = 's32[1]{0}', space=sflag, size = 0x4, scoped, tag = 'scoped memory for custom-call.1']
    %3 = vsyncpa [#allocation0], 0
    %s4 = sshll.u32 %s1, 4
    %s5 = int_to_ptr.vmem [resolvable:$true] %s4
    %7 = dma.hbm_to_vmem [thread:$0]  %s2, 1024, %s5, [#allocation0]
    %8 = dma.done [#allocation0], 1024
    %9 = vsyncpa [#allocation0], 1

// kernel: squeeze.0
$region0: #{squeeze.0}
  %s0 = inlined_call_operand.vmem [shape: f32[1,2,4,16], index: 0, kind: input, shape index: {}]
  %s1 = inlined_call_operand.vmem [shape: f32[2,4,4,4], index: 1, kind: output, shape index: {}]
  $region1: #{squeeze.0} parent=0
    #allocation0 [shape = 'u8[32768]{0}', space=vmem, size = 0x8000, scoped, tag = 'scoped mem for output reshape']
    #allocation1 [shape = 'u8[8192]{0}', space=vmem, size = 0x2000, scoped, tag = 'scoped mem for input reshape']
    %s3 = sshllo.u32 0, 4
    %s4 = scalar_lea.vmem %s0, 4
    %v5 = vld [vmem:[%s4] sm:%s3]
    %s6 = scalar_lea.vmem [#allocation1], 8
    %7 = vst [vmem:[%s6] sm:%s3] %v5
    %v8 = vld [vmem:[%s0] sm:%s3]
    %9 = vst [vmem:[#allocation1] sm:%s3] %v8
    %v10 = vld [vmem:[#allocation1] sm:$0xf]
    %vm11 = vcmask 31744
    %12 = vst.msk [vmem:[#allocation0] ss:$8 sm:$0xf] %vm11, %v10
    %s13 = scalar_lea.vmem [#allocation1], 8
    %v14 = vld [vmem:[%s13] sm:$0xf]
    %vm15 = vcmask 31744
    %s16 = scalar_lea.vmem [#allocation0], 32
    %17 = vst.msk [vmem:[%s16] ss:$8 sm:$0xf] %vm15, %v14
    %v18 = vld.sshfl [vmem:[#allocation1] sm:$0xff pattern:$0xba983210]
    %19 = vrot.lane.b32.xlu0 %v18, 124
    %v20 = vpop.permute.xlu0 %19
    %vm21 = vcmask 31744
    %s22 = scalar_lea.vmem [#allocation0], 1
    %23 = vst.msk [vmem:[%s22] ss:$8 sm:$0xf] %vm21, %v20
    %s24 = scalar_lea.vmem [#allocation0], 1
    %25 = vst.msk [vmem:[%s24] ss:$8 sm:$0xf0] %vm21, %v20
    %v26 = vld.sshfl [vmem:[#allocation1] sm:$0xff pattern:$0xba983210]
    %27 = vrot.lane.b32.xlu0 %v26, 120
    %v28 = vpop.permute.xlu0 %27
    %vm29 = vcmask 31744
    %s30 = scalar_lea.vmem [#allocation0], 2
    %31 = vst.msk [vmem:[%s30] ss:$8 sm:$0xf] %vm29, %v28
    %s32 = scalar_lea.vmem [#allocation0], 2
    %33 = vst.msk [vmem:[%s32] ss:$8 sm:$0xf0] %vm29, %v28
    %v34 = vld.sshfl [vmem:[#allocation1] sm:$0xff pattern:$0xba983210]
    %35 = vrot.lane.b32.xlu0 %v34, 116
    %v36 = vpop.permute.xlu0 %35
    %vm37 = vcmask 31744
    %s38 = scalar_lea.vmem [#allocation0], 3
    %39 = vst.msk [vmem:[%s38] ss:$8 sm:$0xf] %vm37, %v36
    %s40 = scalar_lea.vmem [#allocation0], 3
    %41 = vst.msk [vmem:[%s40] ss:$8 sm:$0xf0] %vm37, %v36
    %s43 = sshllo.u32 0, 4
    %v45 = vld [vmem:[#allocation0] sm:%s43]
    %s46 = sshllo.u32 0, 4
    %47 = vst [vmem:[%s1] sm:%s46] %v45
    %s48 = scalar_lea.vmem [#allocation0], 8
    %v49 = vld [vmem:[%s48] sm:%s43]
    %s50 = sshllo.u32 0, 4
    %s51 = scalar_lea.vmem %s1, 4
    %52 = vst [vmem:[%s51] sm:%s50] %v49
    %s53 = scalar_lea.vmem [#allocation0], 16
    %v54 = vld [vmem:[%s53] sm:%s43]
    %s55 = sshllo.u32 0, 4
    %s56 = smul.addr 4, 2
    %s57 = scalar_lea.vmem %s1, %s56
    %58 = vst [vmem:[%s57] sm:%s55] %v54
    %s59 = scalar_lea.vmem [#allocation0], 24
    %v60 = vld [vmem:[%s59] sm:%s43]
    %s61 = sshllo.u32 0, 4
    %s62 = smul.addr 4, 3
    %s63 = scalar_lea.vmem %s1, %s62
    %64 = vst [vmem:[%s63] sm:%s61] %v60
    %s65 = scalar_lea.vmem [#allocation0], 32
    %v66 = vld [vmem:[%s65] sm:%s43]
    %s67 = sshllo.u32 0, 4
    %s68 = smul.addr 4, 4
    %s69 = scalar_lea.vmem %s1, %s68
    %70 = vst [vmem:[%s69] sm:%s67] %v66
    %s71 = scalar_lea.vmem [#allocation0], 40
    %v72 = vld [vmem:[%s71] sm:%s43]
    %s73 = sshllo.u32 0, 4
    %s74 = smul.addr 4, 5
    %s75 = scalar_lea.vmem %s1, %s74
    %76 = vst [vmem:[%s75] sm:%s73] %v72
    %s77 = scalar_lea.vmem [#allocation0], 48
    %v78 = vld [vmem:[%s77] sm:%s43]
    %s79 = sshllo.u32 0, 4
    %s80 = smul.addr 4, 6
    %s81 = scalar_lea.vmem %s1, %s80
    %82 = vst [vmem:[%s81] sm:%s79] %v78
    %s83 = scalar_lea.vmem [#allocation0], 56
    %v84 = vld [vmem:[%s83] sm:%s43]
    %s85 = sshllo.u32 0, 4
    %s86 = smul.addr 4, 7
    %s87 = scalar_lea.vmem %s1, %s86
    %88 = vst [vmem:[%s87] sm:%s85] %v84

// kernel: reverse.0
$region0: #{reverse.0}
  %s0 = inlined_call_operand.vmem [shape: f32[2,4,16,7], index: 0, kind: input, shape index: {}]
  %s1 = inlined_call_operand.vmem [shape: f32[2,4,16,7], index: 1, kind: output, shape index: {}]
  $region1: #{reverse.0} parent=0
    #allocation0 [shape = 'u8[65536]{0}', space=vmem, size = 0x10000, scoped, tag = 'operand span for operand 0']
    #allocation1 [shape = 'u8[32768]{0}', space=vmem, size = 0x8000, scoped, tag = 'operand span for operand 1']
    %s2 = scalar_lea.vmem [#allocation0], 8
    // Predicated region
    $region2: #{reverse.0} parent=1 // pred_check
      _
    $region3: #{reverse.0} parent=1 // pred_check_branch
      %4 = sbr.rel (0) target = $region5
    $region4: #{reverse.0} parent=1 // pred_region
      // Predicated region
      $region6: #{reverse.0} parent=4 // pred_check
        _
      $region7: #{reverse.0} parent=4 // pred_check_branch
        %6 = sbr.rel (0) target = $region9
      $region8: #{reverse.0} parent=4 // pred_region
        // Predicated region
        $region21: #{reverse.0} parent=8 // pred_check
          _
        $region22: #{reverse.0} parent=8 // pred_check_branch
          %35 = sbr.rel (0) target = $region24
        $region23: #{reverse.0} parent=8 // pred_region
          loop: start=0, step=1, limit=1
          $region25: #{reverse.0} parent=23 // loop_pre_header
            _
          $region26: #{reverse.0} parent=23 // loop_header
            %s37 = sphi 0, %s41
            %p38 = scmp.ge.s32.totalorder %s37, 1
            %s42 = sphi %s0, %s0
            %s43 = sphi %s2, %s2
          $region27: #{reverse.0} parent=23 // loop_header_branch
            %40 = sbr.rel (%p38) target = $region31
          $region28: #{reverse.0} parent=23 // loop_body
            %v44 = vld [vmem:[%s42] sm:$0xff]
            %45 = vst [vmem:[%s43] sm:$0xff] %v44
            %v46 = vld [vmem:[%s42 + $0x8] sm:$0xff]
            %47 = vst [vmem:[%s43 + $0x10] sm:$0xff] %v46
            %v48 = vld [vmem:[%s42 + $0x10] sm:$0xff]
            %49 = vst [vmem:[%s43 + $0x20] sm:$0xff] %v48
            %v50 = vld [vmem:[%s42 + $0x18] sm:$0xff]
            %51 = vst [vmem:[%s43 + $0x30] sm:$0xff] %v50
            %v52 = vld [vmem:[%s42 + $0x20] sm:$0xff]
            %53 = vst [vmem:[%s43 + $0x40] sm:$0xff] %v52
            %v54 = vld [vmem:[%s42 + $0x28] sm:$0xff]
            %55 = vst [vmem:[%s43 + $0x50] sm:$0xff] %v54
            %v56 = vld [vmem:[%s42 + $0x30] sm:$0xff]
            %57 = vst [vmem:[%s43 + $0x60] sm:$0xff] %v56
            %v58 = vld [vmem:[%s42 + $0x38] sm:$0xff]
            %59 = vst [vmem:[%s43 + $0x70] sm:$0xff] %v58
          $region29: #{reverse.0} parent=23 // loop_footer
            %s41 = sadd.s32 1, %s37
          $region30: #{reverse.0} parent=23 // loop_footer_branch
            %36 = sbr.rel target = $region26
          $region31: #{reverse.0} parent=23 // loop_exit
            _
        $region24: #{reverse.0} parent=8 // pred_fallthru
          _
        // Predicated region
        $region32: #{reverse.0} parent=8 // pred_check
          _
        $region33: #{reverse.0} parent=8 // pred_check_branch
          %61 = sbr.rel target = $region35
        $region34: #{reverse.0} parent=8 // pred_region
          _
        $region35: #{reverse.0} parent=8 // pred_fallthru
          _
      $region9: #{reverse.0} parent=4 // pred_fallthru
        _
      // Predicated region
      $region10: #{reverse.0} parent=4 // pred_check
        _
      $region11: #{reverse.0} parent=4 // pred_check_branch
        %8 = sbr.rel target = $region13
      $region12: #{reverse.0} parent=4 // pred_region
        loop: start=0, step=1, limit=1
        $region14: #{reverse.0} parent=12 // loop_pre_header
          _
        $region15: #{reverse.0} parent=12 // loop_header
          %s11 = sphi 0, %s15
          %p12 = scmp.ge.s32.totalorder %s11, 1
          %s16 = sphi %s0, %s0
          %s17 = sphi %s2, %s2
        $region16: #{reverse.0} parent=12 // loop_header_branch
          %14 = sbr.rel (%p12) target = $region20
        $region17: #{reverse.0} parent=12 // loop_body
          %v18 = vld [vmem:[%s16] sm:$0xff]
          %19 = vst [vmem:[%s17] sm:$0xff] %v18
          %v20 = vld [vmem:[%s16 + $0x8] sm:$0xff]
          %21 = vst [vmem:[%s17 + $0x10] sm:$0xff] %v20
          %v22 = vld [vmem:[%s16 + $0x10] sm:$0xff]
          %23 = vst [vmem:[%s17 + $0x20] sm:$0xff] %v22
          %v24 = vld [vmem:[%s16 + $0x18] sm:$0xff]
          %25 = vst [vmem:[%s17 + $0x30] sm:$0xff] %v24
          %v26 = vld [vmem:[%s16 + $0x20] sm:$0xff]
          %27 = vst [vmem:[%s17 + $0x40] sm:$0xff] %v26
          %v28 = vld [vmem:[%s16 + $0x28] sm:$0xff]
          %29 = vst [vmem:[%s17 + $0x50] sm:$0xff] %v28
          %v30 = vld [vmem:[%s16 + $0x30] sm:$0xff]
          %31 = vst [vmem:[%s17 + $0x60] sm:$0xff] %v30
          %v32 = vld [vmem:[%s16 + $0x38] sm:$0xff]
          %33 = vst [vmem:[%s17 + $0x70] sm:$0xff] %v32
        $region18: #{reverse.0} parent=12 // loop_footer
          %s15 = sadd.s32 1, %s11
        $region19: #{reverse.0} parent=12 // loop_footer_branch
          %10 = sbr.rel target = $region15
        $region20: #{reverse.0} parent=12 // loop_exit
          _
      $region13: #{reverse.0} parent=4 // pred_fallthru
        _
    $region5: #{reverse.0} parent=1 // pred_fallthru
      _
    %62 = vnop
    %s63 = scalar_lea.vmem [#allocation0], 7
    %v64 = vld [vmem:[%s63] ss:$-1 sm:$0xff]
    %v65 = vrot.slane %v64, 1
    %66 = vst [vmem:[#allocation1] sm:$0xff] %v65
    %s67 = scalar_lea.vmem [#allocation0], 8
    %s68 = scalar_lea.vmem %s67, 7 [#allocation0]
    %v69 = vld [vmem:[%s68] ss:$-1 sm:$0xff]
    %v70 = vrot.slane %v69, 1
    %v71 = vlaneseq
    %v72 = vshrl.u32 %v71, 7
    %vm73 = vcmp.lt.s32.totalorder %v72, 7
    %74 = vst.msk [vmem:[#allocation1] sm:$0xff] %vm73, %v70
    %s75 = scalar_lea.vmem [#allocation1], 8
    %s76 = scalar_lea.vmem [#allocation0], 16
    %s77 = scalar_lea.vmem %s76, 7 [#allocation0]
    %v78 = vld [vmem:[%s77] ss:$-1 sm:$0xff]
    %v79 = vrot.slane %v78, 1
    %80 = vst [vmem:[%s75] sm:$0xff] %v79
    %s81 = scalar_lea.vmem %s76, 8 [#allocation0]
    %s82 = scalar_lea.vmem %s81, 7 [#allocation0]
    %v83 = vld [vmem:[%s82] ss:$-1 sm:$0xff]
    %v84 = vrot.slane %v83, 1
    %v85 = vlaneseq
    %v86 = vshrl.u32 %v85, 7
    %vm87 = vcmp.lt.s32.totalorder %v86, 7
    %88 = vst.msk [vmem:[%s75] sm:$0xff] %vm87, %v84
    %s89 = scalar_lea.vmem [#allocation1], 16
    %s90 = scalar_lea.vmem [#allocation0], 32
    %s91 = scalar_lea.vmem %s90, 7 [#allocation0]
    %v92 = vld [vmem:[%s91] ss:$-1 sm:$0xff]
    %v93 = vrot.slane %v92, 1
    %94 = vst [vmem:[%s89] sm:$0xff] %v93
    %s95 = scalar_lea.vmem %s90, 8 [#allocation0]
    %s96 = scalar_lea.vmem %s95, 7 [#allocation0]
    %v97 = vld [vmem:[%s96] ss:$-1 sm:$0xff]
    %v98 = vrot.slane %v97, 1
    %v99 = vlaneseq
    %v100 = vshrl.u32 %v99, 7
    %vm101 = vcmp.lt.s32.totalorder %v100, 7
    %102 = vst.msk [vmem:[%s89] sm:$0xff] %vm101, %v98
    %s103 = scalar_lea.vmem [#allocation1], 24
    %s104 = scalar_lea.vmem [#allocation0], 48
    %s105 = scalar_lea.vmem %s104, 7 [#allocation0]
    %v106 = vld [vmem:[%s105] ss:$-1 sm:$0xff]
    %v107 = vrot.slane %v106, 1
    %108 = vst [vmem:[%s103] sm:$0xff] %v107
    %s109 = scalar_lea.vmem %s104, 8 [#allocation0]
    %s110 = scalar_lea.vmem %s109, 7 [#allocation0]
    %v111 = vld [vmem:[%s110] ss:$-1 sm:$0xff]
    %v112 = vrot.slane %v111, 1
    %v113 = vlaneseq
    %v114 = vshrl.u32 %v113, 7
    %vm115 = vcmp.lt.s32.totalorder %v114, 7
    %116 = vst.msk [vmem:[%s103] sm:$0xff] %vm115, %v112
    %s117 = scalar_lea.vmem [#allocation1], 32
    %s118 = scalar_lea.vmem [#allocation0], 64
    %s119 = scalar_lea.vmem %s118, 7 [#allocation0]
    %v120 = vld [vmem:[%s119] ss:$-1 sm:$0xff]
    %v121 = vrot.slane %v120, 1
    %122 = vst [vmem:[%s117] sm:$0xff] %v121
    %s123 = scalar_lea.vmem %s118, 8 [#allocation0]
    %s124 = scalar_lea.vmem %s123, 7 [#allocation0]
    %v125 = vld [vmem:[%s124] ss:$-1 sm:$0xff]
    %v126 = vrot.slane %v125, 1
    %v127 = vlaneseq
    %v128 = vshrl.u32 %v127, 7
    %vm129 = vcmp.lt.s32.totalorder %v128, 7
    %130 = vst.msk [vmem:[%s117] sm:$0xff] %vm129, %v126
    %s131 = scalar_lea.vmem [#allocation1], 40
    %s132 = scalar_lea.vmem [#allocation0], 80
    %s133 = scalar_lea.vmem %s132, 7 [#allocation0]
    %v134 = vld [vmem:[%s133] ss:$-1 sm:$0xff]
    %v135 = vrot.slane %v134, 1
    %136 = vst [vmem:[%s131] sm:$0xff] %v135
    %s137 = scalar_lea.vmem %s132, 8 [#allocation0]
    %s138 = scalar_lea.vmem %s137, 7 [#allocation0]
    %v139 = vld [vmem:[%s138] ss:$-1 sm:$0xff]
    %v140 = vrot.slane %v139, 1
    %v141 = vlaneseq
    %v142 = vshrl.u32 %v141, 7
    %vm143 = vcmp.lt.s32.totalorder %v142, 7
    %144 = vst.msk [vmem:[%s131] sm:$0xff] %vm143, %v140
    %s145 = scalar_lea.vmem [#allocation1], 48
    %s146 = scalar_lea.vmem [#allocation0], 96
    %s147 = scalar_lea.vmem %s146, 7 [#allocation0]
    %v148 = vld [vmem:[%s147] ss:$-1 sm:$0xff]
    %v149 = vrot.slane %v148, 1
    %150 = vst [vmem:[%s145] sm:$0xff] %v149
    %s151 = scalar_lea.vmem %s146, 8 [#allocation0]
    %s152 = scalar_lea.vmem %s151, 7 [#allocation0]
    %v153 = vld [vmem:[%s152] ss:$-1 sm:$0xff]
    %v154 = vrot.slane %v153, 1
    %v155 = vlaneseq
    %v156 = vshrl.u32 %v155, 7
    %vm157 = vcmp.lt.s32.totalorder %v156, 7
    %158 = vst.msk [vmem:[%s145] sm:$0xff] %vm157, %v154
    %s159 = scalar_lea.vmem [#allocation1], 56
    %s160 = scalar_lea.vmem [#allocation0], 112
    %s161 = scalar_lea.vmem %s160, 7 [#allocation0]
    %v162 = vld [vmem:[%s161] ss:$-1 sm:$0xff]
    %v163 = vrot.slane %v162, 1
    %164 = vst [vmem:[%s159] sm:$0xff] %v163
    %s165 = scalar_lea.vmem %s160, 8 [#allocation0]
    %s166 = scalar_lea.vmem %s165, 7 [#allocation0]
    %v167 = vld [vmem:[%s166] ss:$-1 sm:$0xff]
    %v168 = vrot.slane %v167, 1
    %v169 = vlaneseq
    %v170 = vshrl.u32 %v169, 7
    %vm171 = vcmp.lt.s32.totalorder %v170, 7
    %172 = vst.msk [vmem:[%s159] sm:$0xff] %vm171, %v168
    // Predicated region
    $region36: #{reverse.0} parent=1 // pred_check
      _
    $region37: #{reverse.0} parent=1 // pred_check_branch
      %174 = sbr.rel (0) target = $region39
    $region38: #{reverse.0} parent=1 // pred_region
      // Predicated region
      $region40: #{reverse.0} parent=38 // pred_check
        _
      $region41: #{reverse.0} parent=38 // pred_check_branch
        %176 = sbr.rel (0) target = $region43
      $region42: #{reverse.0} parent=38 // pred_region
        // Predicated region
        $region55: #{reverse.0} parent=42 // pred_check
          _
        $region56: #{reverse.0} parent=42 // pred_check_branch
          %205 = sbr.rel (0) target = $region58
        $region57: #{reverse.0} parent=42 // pred_region
          loop: start=0, step=1, limit=1
          $region59: #{reverse.0} parent=57 // loop_pre_header
            _
          $region60: #{reverse.0} parent=57 // loop_header
            %s207 = sphi 0, %s211
            %p208 = scmp.ge.s32.totalorder %s207, 1
            %s212 = sphi [#allocation1], [#allocation1]
            %s213 = sphi %s1, %s1
          $region61: #{reverse.0} parent=57 // loop_header_branch
            %210 = sbr.rel (%p208) target = $region65
          $region62: #{reverse.0} parent=57 // loop_body
            %v214 = vld [vmem:[%s212] sm:$0xff]
            %215 = vst [vmem:[%s213] sm:$0xff] %v214
            %v216 = vld [vmem:[%s212 + $0x8] sm:$0xff]
            %217 = vst [vmem:[%s213 + $0x8] sm:$0xff] %v216
            %v218 = vld [vmem:[%s212 + $0x10] sm:$0xff]
            %219 = vst [vmem:[%s213 + $0x10] sm:$0xff] %v218
            %v220 = vld [vmem:[%s212 + $0x18] sm:$0xff]
            %221 = vst [vmem:[%s213 + $0x18] sm:$0xff] %v220
            %v222 = vld [vmem:[%s212 + $0x20] sm:$0xff]
            %223 = vst [vmem:[%s213 + $0x20] sm:$0xff] %v222
            %v224 = vld [vmem:[%s212 + $0x28] sm:$0xff]
            %225 = vst [vmem:[%s213 + $0x28] sm:$0xff] %v224
            %v226 = vld [vmem:[%s212 + $0x30] sm:$0xff]
            %227 = vst [vmem:[%s213 + $0x30] sm:$0xff] %v226
            %v228 = vld [vmem:[%s212 + $0x38] sm:$0xff]
            %229 = vst [vmem:[%s213 + $0x38] sm:$0xff] %v228
          $region63: #{reverse.0} parent=57 // loop_footer
            %s211 = sadd.s32 1, %s207
          $region64: #{reverse.0} parent=57 // loop_footer_branch
            %206 = sbr.rel target = $region60
          $region65: #{reverse.0} parent=57 // loop_exit
            _
        $region58: #{reverse.0} parent=42 // pred_fallthru
          _
        // Predicated region
        $region66: #{reverse.0} parent=42 // pred_check
          _
        $region67: #{reverse.0} parent=42 // pred_check_branch
          %231 = sbr.rel target = $region69
        $region68: #{reverse.0} parent=42 // pred_region
          _
        $region69: #{reverse.0} parent=42 // pred_fallthru
          _
      $region43: #{reverse.0} parent=38 // pred_fallthru
        _
      // Predicated region
      $region44: #{reverse.0} parent=38 // pred_check
        _
      $region45: #{reverse.0} parent=38 // pred_check_branch
        %178 = sbr.rel target = $region47
      $region46: #{reverse.0} parent=38 // pred_region
        loop: start=0, step=1, limit=1
        $region48: #{reverse.0} parent=46 // loop_pre_header
          _
        $region49: #{reverse.0} parent=46 // loop_header
          %s181 = sphi 0, %s185
          %p182 = scmp.ge.s32.totalorder %s181, 1
          %s186 = sphi [#allocation1], [#allocation1]
          %s187 = sphi %s1, %s1
        $region50: #{reverse.0} parent=46 // loop_header_branch
          %184 = sbr.rel (%p182) target = $region54
        $region51: #{reverse.0} parent=46 // loop_body
          %v188 = vld [vmem:[%s186] sm:$0xff]
          %189 = vst [vmem:[%s187] sm:$0xff] %v188
          %v190 = vld [vmem:[%s186 + $0x8] sm:$0xff]
          %191 = vst [vmem:[%s187 + $0x8] sm:$0xff] %v190
          %v192 = vld [vmem:[%s186 + $0x10] sm:$0xff]
          %193 = vst [vmem:[%s187 + $0x10] sm:$0xff] %v192
          %v194 = vld [vmem:[%s186 + $0x18] sm:$0xff]
          %195 = vst [vmem:[%s187 + $0x18] sm:$0xff] %v194
          %v196 = vld [vmem:[%s186 + $0x20] sm:$0xff]
          %197 = vst [vmem:[%s187 + $0x20] sm:$0xff] %v196
          %v198 = vld [vmem:[%s186 + $0x28] sm:$0xff]
          %199 = vst [vmem:[%s187 + $0x28] sm:$0xff] %v198
          %v200 = vld [vmem:[%s186 + $0x30] sm:$0xff]
          %201 = vst [vmem:[%s187 + $0x30] sm:$0xff] %v200
          %v202 = vld [vmem:[%s186 + $0x38] sm:$0xff]
          %203 = vst [vmem:[%s187 + $0x38] sm:$0xff] %v202
        $region52: #{reverse.0} parent=46 // loop_footer
          %s185 = sadd.s32 1, %s181
        $region53: #{reverse.0} parent=46 // loop_footer_branch
          %180 = sbr.rel target = $region49
        $region54: #{reverse.0} parent=46 // loop_exit
          _
      $region47: #{reverse.0} parent=38 // pred_fallthru
        _
    $region39: #{reverse.0} parent=1 // pred_fallthru
      _
    %232 = vnop

// kernel: spectral_conv2d_fast.1
$region0: #{spectral_conv2d_fast.1}
  #allocation0 [shape = 'u32[]', space=smem, size = 0x4, offset = 0x4, fixed_abs, tag = 'smem constant byte address 0x4 - core index']
  #allocation1 [shape = 'u32[144,128]{1,0:T(1,128)}', space=vmem, size = 0x12000, scoped, tag = 'internal scratch']
  %s0 = inlined_call_operand.vmem [shape: f32[2,2,2,4,128], index: 0, kind: input, shape index: {}]
  %s1 = inlined_call_operand.vmem [shape: f32[2,2,4,4,128], index: 1, kind: input, shape index: {}]
  %s2 = inlined_call_operand.vmem [shape: f32[2,2,2,4,128], index: 2, kind: output, shape index: {}]
  %s3 = sld [smem:[#allocation0]]
  $region41: #{spectral_conv2d_fast.1} parent=0
    _
  %s5 = ssub.s32 1, %s3
  %s6 = scalar_select 0, %s5, %s3
  loop: start=0, step=1, limit=4
  $region2: #{spectral_conv2d_fast.1} parent=0 // loop_pre_header
    _
  $region3: #{spectral_conv2d_fast.1} parent=0 // loop_header
    %s8 = sphi 0, %s12
    %p9 = scmp.ge.s32.totalorder %s8, 4
    %s15 = sphi 0, %s27
    %s16 = sphi 0, %s23
    %s17 = sphi 0, %s15
    %s18 = sphi 0, %s16
    %s19 = sphi 0, %s17
    %s20 = sphi 0, %s18
    %s32 = sphi 0, %s34
    %s35 = sphi 0, %s32
    %s36 = sphi 0, %s35
    %s52 = sphi 0, %s36
    %s60 = sphi 0, %s62
    %s63 = sphi 0, %s60
    %s64 = sphi 0, %s63
    %s80 = sphi 0, %s64
    %s88 = sphi 0, %s90
    %s91 = sphi 0, %s88
    %s92 = sphi 0, %s91
    %s108 = sphi 0, %s92
  $region4: #{spectral_conv2d_fast.1} parent=0 // loop_header_branch
    %11 = sbr.rel (%p9) target = $region8
  $region5: #{spectral_conv2d_fast.1} parent=0 // loop_body
    %s13 = ssub.s32 %s8, 1
    %s14 = ssub.s32 %s8, 2
    %s21 = sadd.s32 1, %s16
    %p22 = scmp.ge.s32.totalorder %s21, 1
    %s23 = scalar_select %p22, 0, %s21
    %s24 = sadd.s32 1, %s15
    %s25 = scalar_select %p22, %s24, %s15
    %p26 = scmp.ge.s32.totalorder %s25, 2
    %s27 = scalar_select %p26, 0, %s25
    %s28 = ssub.s32 %s15, %s27
    %s29 = ssub.s32 %s16, %s23
    %s30 = sor.u32 %s28, %s29
    %p31 = scmp.eq.s32.totalorder %s30, 0
    %s33 = sadd.s32 %s32, 1
    %s34 = scalar_select %p31, %s32, %s33
    %p37 = pneg %p31
    %p38 = scmp.eq.s32.totalorder %s8, 1
    %p39 = por %p37, %p38
    %p40 = scmp.ne.s32.totalorder %s32, %s35
    %p41 = scmp.eq.s32.totalorder %s8, 0
    %p42 = por %p40, %p41
    %p43 = scmp.ne.s32.totalorder %s32, %s35
    %p44 = scmp.eq.s32.totalorder %s13, 1
    %p45 = por %p43, %p44
    %p46 = scmp.ne.s32.totalorder %s35, %s36
    %p47 = scmp.eq.s32.totalorder %s13, 0
    %p48 = por %p46, %p47
    %p49 = scmp.ne.s32.totalorder %s35, %s36
    %p50 = scmp.eq.s32.totalorder %s14, 1
    %p51 = por %p49, %p50
    %p53 = scmp.ne.s32.totalorder %s36, %s52
    %p54 = scmp.eq.s32.totalorder %s14, 0
    %p55 = por %p53, %p54
    %s56 = ssub.s32 %s15, %s27
    %s57 = ssub.s32 %s16, %s23
    %s58 = sor.u32 %s56, %s57
    %p59 = scmp.eq.s32.totalorder %s58, 0
    %s61 = sadd.s32 %s60, 1
    %s62 = scalar_select %p59, %s60, %s61
    %p65 = pneg %p59
    %p66 = scmp.eq.s32.totalorder %s8, 1
    %p67 = por %p65, %p66
    %p68 = scmp.ne.s32.totalorder %s60, %s63
    %p69 = scmp.eq.s32.totalorder %s8, 0
    %p70 = por %p68, %p69
    %p71 = scmp.ne.s32.totalorder %s60, %s63
    %p72 = scmp.eq.s32.totalorder %s13, 1
    %p73 = por %p71, %p72
    %p74 = scmp.ne.s32.totalorder %s63, %s64
    %p75 = scmp.eq.s32.totalorder %s13, 0
    %p76 = por %p74, %p75
    %p77 = scmp.ne.s32.totalorder %s63, %s64
    %p78 = scmp.eq.s32.totalorder %s14, 1
    %p79 = por %p77, %p78
    %p81 = scmp.ne.s32.totalorder %s64, %s80
    %p82 = scmp.eq.s32.totalorder %s14, 0
    %p83 = por %p81, %p82
    %s84 = ssub.s32 %s15, %s27
    %s85 = ssub.s32 %s16, %s23
    %s86 = sor.u32 %s84, %s85
    %p87 = scmp.eq.s32.totalorder %s86, 0
    %s89 = sadd.s32 %s88, 1
    %s90 = scalar_select %p87, %s88, %s89
    %p93 = pneg %p87
    %p94 = scmp.eq.s32.totalorder %s8, 1
    %p95 = por %p93, %p94
    %p96 = scmp.ne.s32.totalorder %s88, %s91
    %p97 = scmp.eq.s32.totalorder %s8, 0
    %p98 = por %p96, %p97
    %p99 = scmp.ne.s32.totalorder %s88, %s91
    %p100 = scmp.eq.s32.totalorder %s13, 1
    %p101 = por %p99, %p100
    %p102 = scmp.ne.s32.totalorder %s91, %s92
    %p103 = scmp.eq.s32.totalorder %s13, 0
    %p104 = por %p102, %p103
    %p105 = scmp.ne.s32.totalorder %s91, %s92
    %p106 = scmp.eq.s32.totalorder %s14, 1
    %p107 = por %p105, %p106
    %p109 = scmp.ne.s32.totalorder %s92, %s108
    %p110 = scmp.eq.s32.totalorder %s14, 0
    %p111 = por %p109, %p110
    %p112 = scmp.le.s32.totalorder 1, %s8
    %p113 = scmp.lt.s32.totalorder %s8, 3
    %p114 = pnand %p112, %p113
    %p115 = pneg %p114
    // Predicated region
    $region9: #{spectral_conv2d_fast.1} parent=5 // pred_check
      _
    $region10: #{spectral_conv2d_fast.1} parent=5 // pred_check_branch
      %117 = sbr.rel (%p114) target = $region12
    $region11: #{spectral_conv2d_fast.1} parent=5 // pred_region
      %s118 = ssub.s32 %s8, 1
    $region12: #{spectral_conv2d_fast.1} parent=5 // pred_fallthru
      _
    %p119 = scmp.lt.s32.totalorder %s8, 2
    // Predicated region
    $region13: #{spectral_conv2d_fast.1} parent=5 // pred_check
      %p120 = pneg %p119
    $region14: #{spectral_conv2d_fast.1} parent=5 // pred_check_branch
      %122 = sbr.rel (%p120) target = $region16
    $region15: #{spectral_conv2d_fast.1} parent=5 // pred_region
      // Predicated region
      $region17: #{spectral_conv2d_fast.1} parent=15 // pred_check
        %p123 = pneg %p42
      $region18: #{spectral_conv2d_fast.1} parent=15 // pred_check_branch
        %125 = sbr.rel (%p123) target = $region20
      $region19: #{spectral_conv2d_fast.1} parent=15 // pred_region
        %p126 = scmp.lt.s32.totalorder %s15, 1
        %s127 = scalar_select %p126, %s15, 1
        %p128 = scmp.lt.s32.totalorder %s16, 0
        %s129 = scalar_select %p128, %s16, 0
        %s130 = smul.addr %s127, 4
        %s131 = sadd.s32 %s129, %s130
        %s132 = smul.addr %s131, 4
        %s133 = scalar_lea.vmem %s0, %s132
      $region20: #{spectral_conv2d_fast.1} parent=15 // pred_fallthru
        _
      // Predicated region
      $region21: #{spectral_conv2d_fast.1} parent=15 // pred_check
        %p134 = pneg %p70
      $region22: #{spectral_conv2d_fast.1} parent=15 // pred_check_branch
        %136 = sbr.rel (%p134) target = $region24
      $region23: #{spectral_conv2d_fast.1} parent=15 // pred_region
        %p137 = scmp.lt.s32.totalorder %s15, 1
        %s138 = scalar_select %p137, %s15, 1
        %p139 = scmp.lt.s32.totalorder %s16, 0
        %s140 = scalar_select %p139, %s16, 0
        %s141 = smul.addr %s138, 8
        %s142 = sadd.s32 %s140, %s141
        %s143 = smul.addr %s142, 4
        %s144 = scalar_lea.vmem %s1, %s143
      $region24: #{spectral_conv2d_fast.1} parent=15 // pred_fallthru
        _
    $region16: #{spectral_conv2d_fast.1} parent=5 // pred_fallthru
      _
    %p145 = scmp.le.s32.totalorder 1, %s8
    %p146 = scmp.lt.s32.totalorder %s8, 3
    %p147 = pnand %p145, %p146
    %p148 = pneg %p147
    // Predicated region
    $region25: #{spectral_conv2d_fast.1} parent=5 // pred_check
      _
    $region26: #{spectral_conv2d_fast.1} parent=5 // pred_check_branch
      %150 = sbr.rel (%p147) target = $region28
    $region27: #{spectral_conv2d_fast.1} parent=5 // pred_region
      %s151 = ssub.s32 %s8, 1
      %p152 = scmp.lt.s32.totalorder %s17, 1
      %s153 = scalar_select %p152, %s17, 1
      %p154 = scmp.lt.s32.totalorder %s18, 0
      %s155 = scalar_select %p154, %s18, 0
      %s156 = smul.addr %s153, 4
      %s157 = sadd.s32 %s155, %s156
      %s158 = smul.addr %s157, 4
      %s159 = scalar_lea.vmem %s0, %s158
      %p160 = pneg %p48
      %p161 = pneg %p45
      %p162 = scmp.lt.s32.totalorder %s17, 1
      %s163 = scalar_select %p162, %s17, 1
      %p164 = scmp.lt.s32.totalorder %s18, 0
      %s165 = scalar_select %p164, %s18, 0
      %s166 = smul.addr %s163, 8
      %s167 = sadd.s32 %s165, %s166
      %s168 = smul.addr %s167, 4
      %s169 = scalar_lea.vmem %s1, %s168
      %p170 = pneg %p76
      %p171 = pneg %p73
      %p172 = pneg %p104
      %p173 = pneg %p101
      %p174 = scmp.lt.s32.totalorder %s17, 1
      %s175 = scalar_select %p174, %s17, 1
      %p176 = scmp.lt.s32.totalorder %s18, 0
      %s177 = scalar_select %p176, %s18, 0
      %s178 = smul.addr %s175, 4
      %s179 = sadd.s32 %s177, %s178
      %s180 = smul.addr %s179, 4
      %s181 = scalar_lea.vmem %s2, %s180
      %p182 = scmp.lt.s32.totalorder %s17, 1
      %s183 = scalar_select %p182, %s17, 1
      %p184 = scmp.lt.s32.totalorder %s18, 0
      %s185 = scalar_select %p184, %s18, 0
      %s186 = smul.addr %s183, 4
      %s187 = sadd.s32 %s185, %s186
      %s188 = smul.addr %s187, 4
      %s189 = scalar_lea.vmem %s0, %s188
      %p190 = scmp.lt.s32.totalorder %s17, 1
      %s191 = scalar_select %p190, %s17, 1
      %p192 = scmp.lt.s32.totalorder %s18, 0
      %s193 = scalar_select %p192, %s18, 0
      %s194 = smul.addr %s191, 8
      %s195 = sadd.s32 %s193, %s194
      %s196 = smul.addr %s195, 4
      %s197 = scalar_lea.vmem %s1, %s196
      %p198 = scmp.lt.s32.totalorder %s17, 1
      %s199 = scalar_select %p198, %s17, 1
      %p200 = scmp.lt.s32.totalorder %s18, 0
      %s201 = scalar_select %p200, %s18, 0
      %s202 = smul.addr %s199, 4
      %s203 = sadd.s32 %s201, %s202
      %s204 = smul.addr %s203, 4
      %s205 = scalar_lea.vmem %s2, %s204
      %v206 = vld [vmem:[%s189] sm:$0x1]
      %v207 = vld [vmem:[%s189 + $0x4] sm:$0x1]
      %s208 = scalar_lea.vmem %s189, 8
      %v209 = vld [vmem:[%s208] sm:$0x1]
      %v210 = vld [vmem:[%s208 + $0x4] sm:$0x1]
      %v211 = vld [vmem:[%s197] sm:$0xf]
      %s212 = scalar_lea.vmem %s197, 16
      %v213 = vld [vmem:[%s212] sm:$0xf]
      %v214 = vlaneseq
      %v215 = vshrl.u32 %v214, 7
      %v216 = vsub.s32 0, %v215
      %v217 = vrot.slane %v206, %v216
      %v218 = vlaneseq
      %v219 = vshrl.u32 %v218, 7
      %v220 = vsub.s32 0, %v219
      %v221 = vrot.slane %v207, %v220
      %v222 = vmul.f32 %v217, %v211
      %v223 = vmul.f32 %v221, %v211
      %v224 = vlaneseq
      %v225 = vshrl.u32 %v224, 7
      %v226 = vsub.s32 0, %v225
      %v227 = vrot.slane %v209, %v226
      %v228 = vlaneseq
      %v229 = vshrl.u32 %v228, 7
      %v230 = vsub.s32 0, %v229
      %v231 = vrot.slane %v210, %v230
      %v232 = vmul.f32 %v227, %v213
      %v233 = vmul.f32 %v231, %v213
      %v234 = vsub.f32 %v222, %v232
      %v235 = vsub.f32 %v223, %v233
      %v236 = vmul.f32 %v217, %v213
      %v237 = vmul.f32 %v221, %v213
      %v238 = vmul.f32 %v227, %v211
      %v239 = vmul.f32 %v231, %v211
      %v240 = vadd.f32 %v236, %v238
      %v241 = vadd.f32 %v237, %v239
      %v242 = vld [vmem:[%s189 + $0x1] sm:$0x1]
      %v243 = vld [vmem:[%s189 + $0x5] sm:$0x1]
      %v244 = vld [vmem:[%s208 + $0x1] sm:$0x1]
      %v245 = vld [vmem:[%s208 + $0x5] sm:$0x1]
      %s246 = scalar_lea.vmem %s197, 4
      %v247 = vld [vmem:[%s246] sm:$0xf]
      %s248 = scalar_lea.vmem %s197, 20
      %v249 = vld [vmem:[%s248] sm:$0xf]
      %v250 = vlaneseq
      %v251 = vshrl.u32 %v250, 7
      %v252 = vsub.s32 0, %v251
      %v253 = vrot.slane %v242, %v252
      %v254 = vlaneseq
      %v255 = vshrl.u32 %v254, 7
      %v256 = vsub.s32 0, %v255
      %v257 = vrot.slane %v243, %v256
      %v258 = vmul.f32 %v253, %v247
      %v259 = vmul.f32 %v257, %v247
      %v260 = vlaneseq
      %v261 = vshrl.u32 %v260, 7
      %v262 = vsub.s32 0, %v261
      %v263 = vrot.slane %v244, %v262
      %v264 = vlaneseq
      %v265 = vshrl.u32 %v264, 7
      %v266 = vsub.s32 0, %v265
      %v267 = vrot.slane %v245, %v266
      %v268 = vmul.f32 %v263, %v249
      %v269 = vmul.f32 %v267, %v249
      %v270 = vsub.f32 %v258, %v268
      %v271 = vsub.f32 %v259, %v269
      %v272 = vmul.f32 %v253, %v249
      %v273 = vmul.f32 %v257, %v249
      %v274 = vmul.f32 %v263, %v247
      %v275 = vmul.f32 %v267, %v247
      %v276 = vadd.f32 %v272, %v274
      %v277 = vadd.f32 %v273, %v275
      %v278 = vadd.f32 %v234, %v270
      %v279 = vadd.f32 %v235, %v271
      %v280 = vadd.f32 %v240, %v276
      %v281 = vadd.f32 %v241, %v277
      %v282 = vld [vmem:[%s189 + $0x2] sm:$0x1]
      %v283 = vld [vmem:[%s189 + $0x6] sm:$0x1]
      %v284 = vld [vmem:[%s208 + $0x2] sm:$0x1]
      %v285 = vld [vmem:[%s208 + $0x6] sm:$0x1]
      %s286 = scalar_lea.vmem %s197, 8
      %v287 = vld [vmem:[%s286] sm:$0xf]
      %s288 = scalar_lea.vmem %s197, 24
      %v289 = vld [vmem:[%s288] sm:$0xf]
      %v290 = vlaneseq
      %v291 = vshrl.u32 %v290, 7
      %v292 = vsub.s32 0, %v291
      %v293 = vrot.slane %v282, %v292
      %v294 = vlaneseq
      %v295 = vshrl.u32 %v294, 7
      %v296 = vsub.s32 0, %v295
      %v297 = vrot.slane %v283, %v296
      %v298 = vmul.f32 %v293, %v287
      %v299 = vmul.f32 %v297, %v287
      %v300 = vlaneseq
      %v301 = vshrl.u32 %v300, 7
      %v302 = vsub.s32 0, %v301
      %v303 = vrot.slane %v284, %v302
      %v304 = vlaneseq
      %v305 = vshrl.u32 %v304, 7
      %v306 = vsub.s32 0, %v305
      %v307 = vrot.slane %v285, %v306
      %v308 = vmul.f32 %v303, %v289
      %v309 = vmul.f32 %v307, %v289
      %v310 = vsub.f32 %v298, %v308
      %v311 = vsub.f32 %v299, %v309
      %v312 = vmul.f32 %v293, %v289
      %v313 = vmul.f32 %v297, %v289
      %v314 = vmul.f32 %v303, %v287
      %v315 = vmul.f32 %v307, %v287
      %v316 = vadd.f32 %v312, %v314
      %v317 = vadd.f32 %v313, %v315
      %v318 = vadd.f32 %v278, %v310
      %v319 = vadd.f32 %v279, %v311
      %v320 = vadd.f32 %v280, %v316
      %v321 = vadd.f32 %v281, %v317
      %v322 = vld [vmem:[%s189 + $0x3] sm:$0x1]
      %v323 = vld [vmem:[%s189 + $0x7] sm:$0x1]
      %v324 = vld [vmem:[%s208 + $0x3] sm:$0x1]
      %v325 = vld [vmem:[%s208 + $0x7] sm:$0x1]
      %s326 = scalar_lea.vmem %s197, 12
      %v327 = vld [vmem:[%s326] sm:$0xf]
      %s328 = scalar_lea.vmem %s197, 28
      %v329 = vld [vmem:[%s328] sm:$0xf]
      %v330 = vlaneseq
      %v331 = vshrl.u32 %v330, 7
      %v332 = vsub.s32 0, %v331
      %v333 = vrot.slane %v322, %v332
      %v334 = vlaneseq
      %v335 = vshrl.u32 %v334, 7
      %v336 = vsub.s32 0, %v335
      %v337 = vrot.slane %v323, %v336
      %v338 = vmul.f32 %v333, %v327
      %v339 = vmul.f32 %v337, %v327
      %v340 = vlaneseq
      %v341 = vshrl.u32 %v340, 7
      %v342 = vsub.s32 0, %v341
      %v343 = vrot.slane %v324, %v342
      %v344 = vlaneseq
      %v345 = vshrl.u32 %v344, 7
      %v346 = vsub.s32 0, %v345
      %v347 = vrot.slane %v325, %v346
      %v348 = vmul.f32 %v343, %v329
      %v349 = vmul.f32 %v347, %v329
      %v350 = vsub.f32 %v338, %v348
      %v351 = vsub.f32 %v339, %v349
      %v352 = vmul.f32 %v333, %v329
      %v353 = vmul.f32 %v337, %v329
      %v354 = vmul.f32 %v343, %v327
      %v355 = vmul.f32 %v347, %v327
      %v356 = vadd.f32 %v352, %v354
      %v357 = vadd.f32 %v353, %v355
      %v358 = vadd.f32 %v318, %v350
      %v359 = vadd.f32 %v319, %v351
      %v360 = vadd.f32 %v320, %v356
      %v361 = vadd.f32 %v321, %v357
      %362 = vst [vmem:[%s205] sm:$0xf] %v358
      %363 = vst [vmem:[%s205 + $0x4] sm:$0xf] %v359
      %s364 = scalar_lea.vmem %s205, 8
      %365 = vst [vmem:[%s364] sm:$0xf] %v360
      %366 = vst [vmem:[%s364 + $0x4] sm:$0xf] %v361
      %p367 = scmp.lt.s32.totalorder %s17, 1
      %s368 = scalar_select %p367, %s17, 1
      %p369 = scmp.lt.s32.totalorder %s18, 0
      %s370 = scalar_select %p369, %s18, 0
      %s371 = smul.addr %s368, 4
      %s372 = sadd.s32 %s370, %s371
      %s373 = smul.addr %s372, 4
      %s374 = scalar_lea.vmem %s2, %s373
      // Predicated region
      $region29: #{spectral_conv2d_fast.1} parent=27 // pred_check
        %p375 = pneg %p101
      $region30: #{spectral_conv2d_fast.1} parent=27 // pred_check_branch
        %377 = sbr.rel (%p375) target = $region32
      $region31: #{spectral_conv2d_fast.1} parent=27 // pred_region
        _
      $region32: #{spectral_conv2d_fast.1} parent=27 // pred_fallthru
        _
    $region28: #{spectral_conv2d_fast.1} parent=5 // pred_fallthru
      _
    %p378 = scmp.le.s32.totalorder 2, %s8
    // Predicated region
    $region33: #{spectral_conv2d_fast.1} parent=5 // pred_check
      %p379 = pneg %p378
    $region34: #{spectral_conv2d_fast.1} parent=5 // pred_check_branch
      %381 = sbr.rel (%p379) target = $region36
    $region35: #{spectral_conv2d_fast.1} parent=5 // pred_region
      %s382 = ssub.s32 %s8, 2
      // Predicated region
      $region37: #{spectral_conv2d_fast.1} parent=35 // pred_check
        %p383 = pneg %p107
      $region38: #{spectral_conv2d_fast.1} parent=35 // pred_check_branch
        %385 = sbr.rel (%p383) target = $region40
      $region39: #{spectral_conv2d_fast.1} parent=35 // pred_region
        %p386 = scmp.lt.s32.totalorder %s19, 1
        %s387 = scalar_select %p386, %s19, 1
        %p388 = scmp.lt.s32.totalorder %s20, 0
        %s389 = scalar_select %p388, %s20, 0
        %s390 = smul.addr %s387, 4
        %s391 = sadd.s32 %s389, %s390
        %s392 = smul.addr %s391, 4
        %s393 = scalar_lea.vmem %s2, %s392
      $region40: #{spectral_conv2d_fast.1} parent=35 // pred_fallthru
        _
    $region36: #{spectral_conv2d_fast.1} parent=5 // pred_fallthru
      _
  $region6: #{spectral_conv2d_fast.1} parent=0 // loop_footer
    %s12 = sadd.s32 1, %s8
  $region7: #{spectral_conv2d_fast.1} parent=0 // loop_footer_branch
    %7 = sbr.rel target = $region3
  $region8: #{spectral_conv2d_fast.1} parent=0 // loop_exit
    _

</llo_original>
